<compile_context>
chip_gen: v6e
topology: v6e:2x2x1
jax: 0.10.0
libtpu: 0.0.40
codegen_flags: <defaults>
</compile_context>

<pallas_src>
import jax
import jax.numpy as jnp
from jax.experimental import pallas as pl
from jax.experimental.pallas import tpu as pltpu


def _round_up(n, m):
    return ((n + m - 1) // m) * m


def mlp_kernel(x_ref, w1_ref, b1_ref, w2_ref, b2_ref, o_ref):
    # Hidden layer: (TM, 128) @ (128, 256), bf16 operands, f32 accumulation.
    h = jnp.dot(
        x_ref[...].astype(jnp.bfloat16),
        w1_ref[...].astype(jnp.bfloat16),
        preferred_element_type=jnp.float32,
    )
    h = jnp.maximum(h + b1_ref[...], 0.0)  # bias + ReLU in f32 (v5e-safe)
    # Output layer: (TM, 256) @ (256, 128), bf16 operands, f32 accumulation.
    y = jnp.dot(
        h.astype(jnp.bfloat16),
        w2_ref[...].astype(jnp.bfloat16),
        preferred_element_type=jnp.float32,
    )
    o_ref[...] = (y + b2_ref[...]).astype(o_ref.dtype)


def mlp_forward(x, w1, b1, w2, b2, *, tm=128):
    """x: (B, 20) f32; w1: (20, 256); b1: (1, 256); w2: (256, 10); b2: (1, 10)."""
    B, d_in = x.shape
    d_hid = w1.shape[1]
    d_out = w2.shape[1]

    LANE = 128
    d_in_p = _round_up(d_in, LANE)    # 20  -> 128 (lane-dense x / w1)
    d_out_p = _round_up(d_out, LANE)  # 10  -> 128 (lane-dense output stores)

    # Batch tile: multiple of 8, 128-aligned when B is large, capped for tiny B.
    tm = min(tm, _round_up(B, 8))
    b_pad = _round_up(B, tm)
    grid = (b_pad // tm,)

    # Zero-pad to lane-dense shapes (padding columns of x are zero, so the
    # padded rows of w1 contribute nothing; padded output columns are exact zero).
    x_p = jnp.pad(x, ((0, b_pad - B), (0, d_in_p - d_in)))
    w1_p = jnp.pad(w1, ((0, d_in_p - d_in), (0, 0)))
    w2_p = jnp.pad(w2, ((0, 0), (0, d_out_p - d_out)))
    b2_p = jnp.pad(b2, ((0, 0), (0, d_out_p - d_out)))

    flops = 2 * b_pad * (d_in_p * d_hid + d_hid * d_out_p)
    bytes_accessed = 4 * (
        b_pad * d_in_p + d_in_p * d_hid + d_hid
        + d_hid * d_out_p + d_out_p + b_pad * d_out_p
    )

    out_p = pl.pallas_call(
        mlp_kernel,
        out_shape=jax.ShapeDtypeStruct((b_pad, d_out_p), jnp.float32),
        grid=grid,
        in_specs=[
            pl.BlockSpec((tm, d_in_p), lambda i: (i, 0)),        # x tile, pipelined
            pl.BlockSpec((d_in_p, d_hid), lambda i: (0, 0)),     # w1, VMEM-resident
            pl.BlockSpec((1, d_hid), lambda i: (0, 0)),          # b1, VMEM-resident
            pl.BlockSpec((d_hid, d_out_p), lambda i: (0, 0)),    # w2, VMEM-resident
            pl.BlockSpec((1, d_out_p), lambda i: (0, 0)),        # b2, VMEM-resident
        ],
        out_specs=pl.BlockSpec((tm, d_out_p), lambda i: (i, 0)),  # lane-dense store
        compiler_params=pltpu.CompilerParams(
            dimension_semantics=("parallel",),
        ),
        cost_estimate=pl.CostEstimate(
            flops=flops, transcendentals=0, bytes_accessed=bytes_accessed
        ),
    )(x_p, w1_p, b1, w2_p, b2_p)

    # Strip batch / lane padding back to the logical (B, 10) result.
    return out_p[:B, :d_out]


if __name__ == "__main__":
    B, D_IN, D_HID, D_OUT = 8, 20, 256, 10

    key = jax.random.PRNGKey(0)
    kx, k1, k2, k3, k4 = jax.random.split(key, 5)

    # Deterministic parameter init mimicking PyTorch Linear default:
    # uniform(-1/sqrt(fan_in), 1/sqrt(fan_in)).
    bound1 = 1.0 / (D_IN ** 0.5)
    bound2 = 1.0 / (D_HID ** 0.5)
    w1 = jax.random.uniform(k1, (D_IN, D_HID), jnp.float32, -bound1, bound1)
    b1 = jax.random.uniform(k2, (1, D_HID), jnp.float32, -bound1, bound1)
    w2 = jax.random.uniform(k3, (D_HID, D_OUT), jnp.float32, -bound2, bound2)
    b2 = jax.random.uniform(k4, (1, D_OUT), jnp.float32, -bound2, bound2)

    x = jax.random.normal(kx, (B, D_IN), jnp.float32)

    out = mlp_forward(x, w1, b1, w2, b2)
    jax.block_until_ready(out)

    # Pure-JAX f32 reference of the same forward pass (kernel uses bf16 matmul
    # operands with f32 accumulation, so compare at bf16-level tolerance).
    ref = jnp.maximum(x @ w1 + b1, 0.0) @ w2 + b2
    assert out.shape == (B, D_OUT)
    assert jnp.allclose(out, ref, atol=2e-2, rtol=2e-2)

    print("KERNEL_OK")
</pallas_src>

<mosaic_0001>
module attributes {stable_mosaic.version = 11 : i64} {
  func.func @mlp_kernel(%arg0: i32, %arg1: memref<8x128xf32, #tpu.memory_space<vmem>>, %arg2: memref<128x256xf32, #tpu.memory_space<vmem>>, %arg3: memref<1x256xf32, #tpu.memory_space<vmem>>, %arg4: memref<256x128xf32, #tpu.memory_space<vmem>>, %arg5: memref<1x128xf32, #tpu.memory_space<vmem>>, %arg6: memref<8x128xf32, #tpu.memory_space<vmem>>) attributes {dimension_semantics = [#tpu.dimension_semantics<parallel>], iteration_bounds = array<i64: 1>, scalar_prefetch = 0 : i64, scratch_operands = 0 : i64, tpu.core_type = #tpu.core_type<tc>, window_params = [{transform_indices = @transform_0, window_bounds = array<i64: 8, 128>}, {pipeline_mode = #tpu.pipeline_mode<synchronous>, transform_indices = @transform_1, window_bounds = array<i64: 128, 256>}, {pipeline_mode = #tpu.pipeline_mode<synchronous>, transform_indices = @transform_2, window_bounds = array<i64: 1, 256>}, {pipeline_mode = #tpu.pipeline_mode<synchronous>, transform_indices = @transform_3, window_bounds = array<i64: 256, 128>}, {pipeline_mode = #tpu.pipeline_mode<synchronous>, transform_indices = @transform_4, window_bounds = array<i64: 1, 128>}, {transform_indices = @transform_5, window_bounds = array<i64: 8, 128>}]} {
    %c0 = arith.constant 0 : index
    %c0_0 = arith.constant 0 : index
    %0 = vector.load %arg1[%c0, %c0_0] : memref<8x128xf32, #tpu.memory_space<vmem>>, vector<8x128xf32>
    %1 = arith.truncf %0 : vector<8x128xf32> to vector<8x128xbf16>
    %c0_1 = arith.constant 0 : index
    %c0_2 = arith.constant 0 : index
    %2 = vector.load %arg2[%c0_1, %c0_2] : memref<128x256xf32, #tpu.memory_space<vmem>>, vector<128x256xf32>
    %3 = arith.truncf %2 : vector<128x256xf32> to vector<128x256xbf16>
    %cst = arith.constant dense<0.000000e+00> : vector<8x256xf32>
    %4 = tpu.matmul %1, %3, %cst {dimension_numbers = #tpu.dot_dimension_numbers<[1], [0], [0], [1], [0, 0, 1, 1], [], []>} : vector<8x128xbf16>, vector<128x256xbf16>, vector<8x256xf32> -> vector<8x256xf32>
    %c0_3 = arith.constant 0 : index
    %c0_4 = arith.constant 0 : index
    %5 = vector.load %arg3[%c0_3, %c0_4] : memref<1x256xf32, #tpu.memory_space<vmem>>, vector<1x256xf32>
    %6 = vector.broadcast %5 : vector<1x256xf32> to vector<8x256xf32>
    %7 = arith.addf %4, %6 : vector<8x256xf32>
    %cst_5 = arith.constant 0.000000e+00 : f32
    %8 = vector.broadcast %cst_5 : f32 to vector<8x256xf32>
    %9 = arith.maximumf %7, %8 : vector<8x256xf32>
    %10 = arith.truncf %9 : vector<8x256xf32> to vector<8x256xbf16>
    %c0_6 = arith.constant 0 : index
    %c0_7 = arith.constant 0 : index
    %11 = vector.load %arg4[%c0_6, %c0_7] : memref<256x128xf32, #tpu.memory_space<vmem>>, vector<256x128xf32>
    %12 = arith.truncf %11 : vector<256x128xf32> to vector<256x128xbf16>
    %cst_8 = arith.constant dense<0.000000e+00> : vector<8x128xf32>
    %13 = tpu.matmul %10, %12, %cst_8 {dimension_numbers = #tpu.dot_dimension_numbers<[1], [0], [0], [1], [0, 0, 1, 1], [], []>} : vector<8x256xbf16>, vector<256x128xbf16>, vector<8x128xf32> -> vector<8x128xf32>
    %c0_9 = arith.constant 0 : index
    %c0_10 = arith.constant 0 : index
    %14 = vector.load %arg5[%c0_9, %c0_10] : memref<1x128xf32, #tpu.memory_space<vmem>>, vector<1x128xf32>
    %15 = vector.broadcast %14 : vector<1x128xf32> to vector<8x128xf32>
    %16 = arith.addf %13, %15 : vector<8x128xf32>
    %c0_11 = arith.constant 0 : index
    %c0_12 = arith.constant 0 : index
    %17 = vector.load %arg6[%c0_11, %c0_12] : memref<8x128xf32, #tpu.memory_space<vmem>>, vector<8x128xf32>
    tpu.vector_store %arg6[%c0_11, %c0_12], %16 {strides = array<i32>} : memref<8x128xf32, #tpu.memory_space<vmem>>, vector<8x128xf32>,
    return
  }
  func.func @transform_0(%arg0: i32) -> (i32, i32) {
    %c0_i32 = arith.constant 0 : i32
    %c0_i32_0 = arith.constant 0 : i32
    return %arg0, %c0_i32 : i32, i32
  }
  func.func @transform_1(%arg0: i32) -> (i32, i32) {
    %c0_i32 = arith.constant 0 : i32
    %c0_i32_0 = arith.constant 0 : i32
    %c0_i32_1 = arith.constant 0 : i32
    return %c0_i32, %c0_i32_0 : i32, i32
  }
  func.func @transform_2(%arg0: i32) -> (i32, i32) {
    %c0_i32 = arith.constant 0 : i32
    %c0_i32_0 = arith.constant 0 : i32
    %c0_i32_1 = arith.constant 0 : i32
    return %c0_i32, %c0_i32_0 : i32, i32
  }
  func.func @transform_3(%arg0: i32) -> (i32, i32) {
    %c0_i32 = arith.constant 0 : i32
    %c0_i32_0 = arith.constant 0 : i32
    %c0_i32_1 = arith.constant 0 : i32
    return %c0_i32, %c0_i32_0 : i32, i32
  }
  func.func @transform_4(%arg0: i32) -> (i32, i32) {
    %c0_i32 = arith.constant 0 : i32
    %c0_i32_0 = arith.constant 0 : i32
    %c0_i32_1 = arith.constant 0 : i32
    return %c0_i32, %c0_i32_0 : i32, i32
  }
  func.func @transform_5(%arg0: i32) -> (i32, i32) {
    %c0_i32 = arith.constant 0 : i32
    %c0_i32_0 = arith.constant 0 : i32
    return %arg0, %c0_i32 : i32, i32
  }
}

</mosaic_0001>

<llo_original>
// kernel: tpu_custom_call.1
$region0: #{tpu_custom_call.1}
  #allocation0 [shape = 'u32[]', space=smem, size = 0x4, offset = 0x4, fixed_abs, tag = 'smem constant byte address 0x4 - core index']
  #allocation1 [shape = 'u32[144,128]{1,0:T(1,128)}', space=vmem, size = 0x12000, scoped, tag = 'internal scratch']
  %s0 = inlined_call_operand.hbm [shape: f32[8,128], index: 0, kind: input, shape index: {}]
  %s1 = inlined_call_operand.hbm [shape: f32[128,256], index: 1, kind: input, shape index: {}]
  %s2 = inlined_call_operand.vmem [shape: f32[1,256], index: 2, kind: input, shape index: {}]
  %s3 = inlined_call_operand.hbm [shape: f32[256,128], index: 3, kind: input, shape index: {}]
  %s4 = inlined_call_operand.vmem [shape: f32[1,128], index: 4, kind: input, shape index: {}]
  %s5 = inlined_call_operand.hbm [shape: f32[8,128], index: 5, kind: output, shape index: {}]
  %s6 = sld [smem:[#allocation0]]
  $region42: #{tpu_custom_call.1} parent=0
    _
  %s8 = ssub.s32 1, %s6
  %s9 = scalar_select 0, %s8, %s6
  $region1: #{tpu_custom_call.1} parent=0
    #allocation2 [shape = 'u8[4096]{0}', space=vmem, size = 0x1000, scoped, tag = 'input window, operand 0, single buffered']
    #allocation3 [shape = 's32[1]{0}', space=sflag, size = 0x4, scoped, tag = 'scoped memory for tpu_custom_call.1']
    #allocation4 [shape = 's32[1]{0}', space=sflag, size = 0x4, scoped, tag = 'scoped memory for tpu_custom_call.1']
    #allocation5 [shape = 'u8[131072]{0}', space=vmem, size = 0x20000, scoped, tag = 'input window, operand 1, single buffered']
    #allocation6 [shape = 's32[1]{0}', space=sflag, size = 0x4, scoped, tag = 'scoped memory for tpu_custom_call.1']
    #allocation7 [shape = 'u8[131072]{0}', space=vmem, size = 0x20000, scoped, tag = 'input window, operand 3, single buffered']
    #allocation8 [shape = 'u8[4096]{0}', space=vmem, size = 0x1000, scoped, tag = 'output window, operand 0, single buffered']
    %10 = vsyncpa [#allocation3], 0
    %11 = vsyncpa [#allocation6], 0
    %12 = vsyncpa [#allocation4], 0
    // Predicated region
    $region2: #{tpu_custom_call.1} parent=1 // pred_check
      _
    $region3: #{tpu_custom_call.1} parent=1 // pred_check_branch
      %14 = sbr.rel (0) target = $region5
    $region4: #{tpu_custom_call.1} parent=1 // pred_region
      %s16 = ssub.s32 128, 128
      %17 = vsyncadd [#allocation3], %s16
      %s19 = sshll.u32 [#allocation2], 4
      %s20 = int_to_ptr.vmem [resolvable:$true] %s19
      %22 = dma.hbm_to_vmem [thread:$0]  %s0, 128, %s20, [#allocation3]
    $region5: #{tpu_custom_call.1} parent=1 // pred_fallthru
      _
    // Predicated region
    $region6: #{tpu_custom_call.1} parent=1 // pred_check
      _
    $region7: #{tpu_custom_call.1} parent=1 // pred_check_branch
      %24 = sbr.rel (0) target = $region9
    $region8: #{tpu_custom_call.1} parent=1 // pred_region
      %s26 = ssub.s32 4096, 4096
      %27 = vsyncadd [#allocation6], %s26
      %s28 = sshll.u32 [#allocation5], 4
      %s29 = int_to_ptr.vmem [resolvable:$true] %s28
      %34 = dma.hbm_to_vmem [thread:$0]  %s1, 4096, %s29, [#allocation6], 256, 256, 16
    $region9: #{tpu_custom_call.1} parent=1 // pred_fallthru
      _
    // Predicated region
    $region10: #{tpu_custom_call.1} parent=1 // pred_check
      _
    $region11: #{tpu_custom_call.1} parent=1 // pred_check_branch
      %36 = sbr.rel (0) target = $region13
    $region12: #{tpu_custom_call.1} parent=1 // pred_region
      _
    $region13: #{tpu_custom_call.1} parent=1 // pred_fallthru
      _
    // Predicated region
    $region14: #{tpu_custom_call.1} parent=1 // pred_check
      _
    $region15: #{tpu_custom_call.1} parent=1 // pred_check_branch
      %38 = sbr.rel (0) target = $region17
    $region16: #{tpu_custom_call.1} parent=1 // pred_region
      %s40 = ssub.s32 4096, 4096
      %41 = vsyncadd [#allocation6], %s40
      %s42 = sshll.u32 [#allocation7], 4
      %s43 = int_to_ptr.vmem [resolvable:$true] %s42
      %48 = dma.hbm_to_vmem [thread:$0]  %s3, 4096, %s43, [#allocation6], 128, 128, 8
    $region17: #{tpu_custom_call.1} parent=1 // pred_fallthru
      _
    // Predicated region
    $region18: #{tpu_custom_call.1} parent=1 // pred_check
      _
    $region19: #{tpu_custom_call.1} parent=1 // pred_check_branch
      %50 = sbr.rel (0) target = $region21
    $region20: #{tpu_custom_call.1} parent=1 // pred_region
      _
    $region21: #{tpu_custom_call.1} parent=1 // pred_fallthru
      _
    // Predicated region
    $region22: #{tpu_custom_call.1} parent=1 // pred_check
      _
    $region23: #{tpu_custom_call.1} parent=1 // pred_check_branch
      %52 = sbr.rel (0) target = $region25
    $region24: #{tpu_custom_call.1} parent=1 // pred_region
      %53 = dma.done [#allocation3], 128
    $region25: #{tpu_custom_call.1} parent=1 // pred_fallthru
      _
    // Predicated region
    $region26: #{tpu_custom_call.1} parent=1 // pred_check
      _
    $region27: #{tpu_custom_call.1} parent=1 // pred_check_branch
      %55 = sbr.rel (0) target = $region29
    $region28: #{tpu_custom_call.1} parent=1 // pred_region
      %56 = dma.done [#allocation6], 4096
    $region29: #{tpu_custom_call.1} parent=1 // pred_fallthru
      _
    // Predicated region
    $region30: #{tpu_custom_call.1} parent=1 // pred_check
      _
    $region31: #{tpu_custom_call.1} parent=1 // pred_check_branch
      %58 = sbr.rel (0) target = $region33
    $region32: #{tpu_custom_call.1} parent=1 // pred_region
      %59 = dma.done [#allocation6], 4096
    $region33: #{tpu_custom_call.1} parent=1 // pred_fallthru
      _
    %v61 = vld [vmem:[#allocation2] sm:$0xff]
    %v62 = vpack.c.bf16 %v61, %v61
    %v63 = vld [vmem:[#allocation5] sm:$0xff]
    %v64 = vld [vmem:[#allocation5 + $0x8] sm:$0xff]
    %v65 = vld [vmem:[#allocation5 + $0x10] sm:$0xff]
    %v66 = vld [vmem:[#allocation5 + $0x18] sm:$0xff]
    %v67 = vld [vmem:[#allocation5 + $0x20] sm:$0xff]
    %v68 = vld [vmem:[#allocation5 + $0x28] sm:$0xff]
    %v69 = vld [vmem:[#allocation5 + $0x30] sm:$0xff]
    %v70 = vld [vmem:[#allocation5 + $0x38] sm:$0xff]
    %v71 = vld [vmem:[#allocation5 + $0x40] sm:$0xff]
    %v72 = vld [vmem:[#allocation5 + $0x48] sm:$0xff]
    %v73 = vld [vmem:[#allocation5 + $0x50] sm:$0xff]
    %v74 = vld [vmem:[#allocation5 + $0x58] sm:$0xff]
    %v75 = vld [vmem:[#allocation5 + $0x60] sm:$0xff]
    %v76 = vld [vmem:[#allocation5 + $0x68] sm:$0xff]
    %v77 = vld [vmem:[#allocation5 + $0x70] sm:$0xff]
    %v78 = vld [vmem:[#allocation5 + $0x78] sm:$0xff]
    %v79 = vld [vmem:[#allocation5 + $0x80] sm:$0xff]
    %v80 = vld [vmem:[#allocation5 + $0x88] sm:$0xff]
    %v81 = vld [vmem:[#allocation5 + $0x90] sm:$0xff]
    %v82 = vld [vmem:[#allocation5 + $0x98] sm:$0xff]
    %v83 = vld [vmem:[#allocation5 + $0xa0] sm:$0xff]
    %v84 = vld [vmem:[#allocation5 + $0xa8] sm:$0xff]
    %v85 = vld [vmem:[#allocation5 + $0xb0] sm:$0xff]
    %v86 = vld [vmem:[#allocation5 + $0xb8] sm:$0xff]
    %v87 = vld [vmem:[#allocation5 + $0xc0] sm:$0xff]
    %v88 = vld [vmem:[#allocation5 + $0xc8] sm:$0xff]
    %v89 = vld [vmem:[#allocation5 + $0xd0] sm:$0xff]
    %v90 = vld [vmem:[#allocation5 + $0xd8] sm:$0xff]
    %v91 = vld [vmem:[#allocation5 + $0xe0] sm:$0xff]
    %v92 = vld [vmem:[#allocation5 + $0xe8] sm:$0xff]
    %v93 = vld [vmem:[#allocation5 + $0xf0] sm:$0xff]
    %v94 = vld [vmem:[#allocation5 + $0xf8] sm:$0xff]
    %v95 = vpack.c.bf16 %v65, %v63
    %v96 = vpack.c.bf16 %v66, %v64
    %v97 = vpack.c.bf16 %v69, %v67
    %v98 = vpack.c.bf16 %v70, %v68
    %v99 = vpack.c.bf16 %v73, %v71
    %v100 = vpack.c.bf16 %v74, %v72
    %v101 = vpack.c.bf16 %v77, %v75
    %v102 = vpack.c.bf16 %v78, %v76
    %v103 = vpack.c.bf16 %v81, %v79
    %v104 = vpack.c.bf16 %v82, %v80
    %v105 = vpack.c.bf16 %v85, %v83
    %v106 = vpack.c.bf16 %v86, %v84
    %v107 = vpack.c.bf16 %v89, %v87
    %v108 = vpack.c.bf16 %v90, %v88
    %v109 = vpack.c.bf16 %v93, %v91
    %v110 = vpack.c.bf16 %v94, %v92
    %v111 = vld [vmem:[%s2] sm:$0x3]
    %v113 = vlaneseq
    %v114 = vshrl.u32 %v113, 7
    %v115 = vsub.s32 0, %v114
    %v116 = vrot.slane %v111, %v115
    %v117 = vlaneseq
    %v118 = vshrl.u32 %v117, 7
    %v119 = vsub.s32 1, %v118
    %v120 = vrot.slane %v111, %v119
    %123 = vmatprep.subr.bf16.mxu0 %v110
    %124 = vmatpush1.bf16.msra.mxu0 %v109
    %125 = vmatprep.subr.bf16.mxu0 %v108
    %126 = vmatpush1.bf16.msra.mxu0 %v107
    %127 = vmatprep.subr.bf16.mxu0 %v106
    %128 = vmatpush1.bf16.msra.mxu0 %v105
    %129 = vmatprep.subr.bf16.mxu0 %v104
    %130 = vmatpush1.bf16.msra.mxu0 %v103
    %131 = vmatprep.subr.bf16.mxu0 %v102
    %132 = vmatpush1.bf16.msra.mxu0 %v101
    %133 = vmatprep.subr.bf16.mxu0 %v100
    %134 = vmatpush1.bf16.msra.mxu0 %v99
    %135 = vmatprep.subr.bf16.mxu0 %v98
    %136 = vmatpush1.bf16.msra.mxu0 %v97
    %137 = vmatprep.subr.bf16.mxu0 %v96
    %138 = vmatpush1.bf16.msra.mxu0 %v95
    %139 = vmatprep.subr.bf16.mxu0 0
    %140 = vmatpush2.bf16.msra.mxu0 0
    %141 = vmatprep.subr.bf16.mxu0 0
    %142 = vmatpush2.bf16.msra.mxu0 0
    %143 = vmatprep.subr.bf16.mxu0 0
    %144 = vmatpush2.bf16.msra.mxu0 0
    %145 = vmatprep.subr.bf16.mxu0 0
    %146 = vmatpush2.bf16.msra.mxu0 0
    %147 = vmatprep.subr.bf16.mxu0 0
    %148 = vmatpush2.bf16.msra.mxu0 0
    %149 = vmatprep.subr.bf16.mxu0 0
    %150 = vmatpush2.bf16.msra.mxu0 0
    %151 = vmatprep.subr.bf16.mxu0 0
    %152 = vmatpush2.bf16.msra.mxu0 0
    %153 = vmatprep.subr.bf16.mxu0 0
    %154 = vmatpush2.bf16.msra.mxu0 0
    %155 = vmatprep.mubr.bf16.mxu0 0
    %156 = vmatmul.mubr.bf16.gmra.mxu0 %v62
    %v157 = vpop.f32.mrf.mxu0
    %v158 = vadd.f32 %v116, %v157
    %v159 = vpop.f32.mrf.mxu0
    %v160 = vadd.f32 %v120, %v159
    %v161 = vpop.f32.mrf.mxu0
    %v162 = vpop.f32.mrf.mxu0
    %163 = vdwg.mxu0
    %v164 = vmax.f32 %v158, 0.0
    %v165 = vmax.f32 %v160, 0.0
    %v166 = vpack.c.bf16 %v164, %v164
    %v167 = vpack.c.bf16 %v165, %v165
    %v168 = vld [vmem:[#allocation7] sm:$0xff]
    %v169 = vld [vmem:[#allocation7 + $0x8] sm:$0xff]
    %v170 = vld [vmem:[#allocation7 + $0x10] sm:$0xff]
    %v171 = vld [vmem:[#allocation7 + $0x18] sm:$0xff]
    %v172 = vld [vmem:[#allocation7 + $0x20] sm:$0xff]
    %v173 = vld [vmem:[#allocation7 + $0x28] sm:$0xff]
    %v174 = vld [vmem:[#allocation7 + $0x30] sm:$0xff]
    %v175 = vld [vmem:[#allocation7 + $0x38] sm:$0xff]
    %v176 = vld [vmem:[#allocation7 + $0x40] sm:$0xff]
    %v177 = vld [vmem:[#allocation7 + $0x48] sm:$0xff]
    %v178 = vld [vmem:[#allocation7 + $0x50] sm:$0xff]
    %v179 = vld [vmem:[#allocation7 + $0x58] sm:$0xff]
    %v180 = vld [vmem:[#allocation7 + $0x60] sm:$0xff]
    %v181 = vld [vmem:[#allocation7 + $0x68] sm:$0xff]
    %v182 = vld [vmem:[#allocation7 + $0x70] sm:$0xff]
    %v183 = vld [vmem:[#allocation7 + $0x78] sm:$0xff]
    %v184 = vld [vmem:[#allocation7 + $0x80] sm:$0xff]
    %v185 = vld [vmem:[#allocation7 + $0x88] sm:$0xff]
    %v186 = vld [vmem:[#allocation7 + $0x90] sm:$0xff]
    %v187 = vld [vmem:[#allocation7 + $0x98] sm:$0xff]
    %v188 = vld [vmem:[#allocation7 + $0xa0] sm:$0xff]
    %v189 = vld [vmem:[#allocation7 + $0xa8] sm:$0xff]
    %v190 = vld [vmem:[#allocation7 + $0xb0] sm:$0xff]
    %v191 = vld [vmem:[#allocation7 + $0xb8] sm:$0xff]
    %v192 = vld [vmem:[#allocation7 + $0xc0] sm:$0xff]
    %v193 = vld [vmem:[#allocation7 + $0xc8] sm:$0xff]
    %v194 = vld [vmem:[#allocation7 + $0xd0] sm:$0xff]
    %v195 = vld [vmem:[#allocation7 + $0xd8] sm:$0xff]
    %v196 = vld [vmem:[#allocation7 + $0xe0] sm:$0xff]
    %v197 = vld [vmem:[#allocation7 + $0xe8] sm:$0xff]
    %v198 = vld [vmem:[#allocation7 + $0xf0] sm:$0xff]
    %v199 = vld [vmem:[#allocation7 + $0xf8] sm:$0xff]
    %v200 = vpack.c.bf16 %v169, %v168
    %v201 = vpack.c.bf16 %v171, %v170
    %v202 = vpack.c.bf16 %v173, %v172
    %v203 = vpack.c.bf16 %v175, %v174
    %v204 = vpack.c.bf16 %v177, %v176
    %v205 = vpack.c.bf16 %v179, %v178
    %v206 = vpack.c.bf16 %v181, %v180
    %v207 = vpack.c.bf16 %v183, %v182
    %v208 = vpack.c.bf16 %v185, %v184
    %v209 = vpack.c.bf16 %v187, %v186
    %v210 = vpack.c.bf16 %v189, %v188
    %v211 = vpack.c.bf16 %v191, %v190
    %v212 = vpack.c.bf16 %v193, %v192
    %v213 = vpack.c.bf16 %v195, %v194
    %v214 = vpack.c.bf16 %v197, %v196
    %v215 = vpack.c.bf16 %v199, %v198
    %v216 = vld [vmem:[%s4] sm:$0x1]
    %v218 = vlaneseq
    %v219 = vshrl.u32 %v218, 7
    %v220 = vsub.s32 0, %v219
    %v221 = vrot.slane %v216, %v220
    %223 = vmatprep.subr.bf16.mxu0 0
    %224 = vmatpush1.bf16.msra.mxu0 %v207
    %225 = vmatprep.subr.bf16.mxu0 0
    %226 = vmatpush1.bf16.msra.mxu0 %v206
    %227 = vmatprep.subr.bf16.mxu0 0
    %228 = vmatpush1.bf16.msra.mxu0 %v205
    %229 = vmatprep.subr.bf16.mxu0 0
    %230 = vmatpush1.bf16.msra.mxu0 %v204
    %231 = vmatprep.subr.bf16.mxu0 0
    %232 = vmatpush1.bf16.msra.mxu0 %v203
    %233 = vmatprep.subr.bf16.mxu0 0
    %234 = vmatpush1.bf16.msra.mxu0 %v202
    %235 = vmatprep.subr.bf16.mxu0 0
    %236 = vmatpush1.bf16.msra.mxu0 %v201
    %237 = vmatprep.subr.bf16.mxu0 0
    %238 = vmatpush1.bf16.msra.mxu0 %v200
    %239 = vmatprep.subr.bf16.mxu0 0
    %240 = vmatpush2.bf16.msra.mxu0 %v215
    %241 = vmatprep.subr.bf16.mxu0 0
    %242 = vmatpush2.bf16.msra.mxu0 %v214
    %243 = vmatprep.subr.bf16.mxu0 0
    %244 = vmatpush2.bf16.msra.mxu0 %v213
    %245 = vmatprep.subr.bf16.mxu0 0
    %246 = vmatpush2.bf16.msra.mxu0 %v212
    %247 = vmatprep.subr.bf16.mxu0 0
    %248 = vmatpush2.bf16.msra.mxu0 %v211
    %249 = vmatprep.subr.bf16.mxu0 0
    %250 = vmatpush2.bf16.msra.mxu0 %v210
    %251 = vmatprep.subr.bf16.mxu0 0
    %252 = vmatpush2.bf16.msra.mxu0 %v209
    %253 = vmatprep.subr.bf16.mxu0 0
    %254 = vmatpush2.bf16.msra.mxu0 %v208
    %255 = vmatprep.mubr.bf16.mxu0 %v167
    %256 = vmatmul.mubr.bf16.gmra.mxu0 %v166
    %v257 = vpop.f32.mrf.mxu0
    %v258 = vadd.f32 %v221, %v257
    %v259 = vpop.f32.mrf.mxu0
    %v260 = vpop.f32.mrf.mxu0
    %v261 = vpop.f32.mrf.mxu0
    %262 = vdwg.mxu0
    %263 = vst [vmem:[#allocation8] sm:$0xff] %v258
    // Predicated region
    $region34: #{tpu_custom_call.1} parent=1 // pred_check
      _
    $region35: #{tpu_custom_call.1} parent=1 // pred_check_branch
      %265 = sbr.rel (0) target = $region37
    $region36: #{tpu_custom_call.1} parent=1 // pred_region
      %s267 = ssub.s32 128, 128
      %268 = vsyncadd [#allocation4], %s267
      %s270 = sshll.u32 [#allocation8], 4
      %s271 = int_to_ptr.vmem [resolvable:$true] %s270
      %273 = dma.vmem_to_hbm [thread:$0]  %s271, 128, %s5, [#allocation4]
    $region37: #{tpu_custom_call.1} parent=1 // pred_fallthru
      _
    // Predicated region
    $region38: #{tpu_custom_call.1} parent=1 // pred_check
      _
    $region39: #{tpu_custom_call.1} parent=1 // pred_check_branch
      %275 = sbr.rel (0) target = $region41
    $region40: #{tpu_custom_call.1} parent=1 // pred_region
      %276 = dma.done [#allocation4], 128
    $region41: #{tpu_custom_call.1} parent=1 // pred_fallthru
      _
    %277 = vsyncpa [#allocation3], 1
    %278 = vsyncpa [#allocation6], 1
    %279 = vsyncpa [#allocation4], 1

</llo_original>
